<compile_context>
chip_gen: v5e
topology: v5e:2x2
jax: 0.10.0
libtpu: 0.0.40
codegen_flags: <defaults>
</compile_context>

<pallas_src>
import functools

import jax
import jax.numpy as jnp
from jax.experimental import pallas as pl
from jax.experimental.pallas import tpu as pltpu

_MIB = 1024 * 1024


def _linear_kernel(x_ref, w_ref, b_ref, o_ref, acc_ref):
    # x_ref: [tm, tk], w_ref: [tn, tk] (PyTorch layout), b_ref: [1, tn],
    # o_ref: [tm, tn], acc_ref: [tm, tn] f32 scratch (persists across k).
    k = pl.program_id(2)

    # Contract the last (lane) axis of both operands -> [tm, tn]; pure MXU.
    d = jax.lax.dot_general(
        x_ref[...],
        w_ref[...],
        dimension_numbers=(((1,), (1,)), ((), ())),
        preferred_element_type=jnp.float32,
    )

    @pl.when(k == 0)
    def _():
        acc_ref[...] = d            # direct assign: no zero-fill, no acc load

    @pl.when(k != 0)
    def _():
        acc_ref[...] += d

    @pl.when(k == pl.num_programs(2) - 1)
    def _():
        # Bias add once, in f32, in the epilogue only.
        o_ref[...] = (acc_ref[...] + b_ref[...].astype(jnp.float32)).astype(o_ref.dtype)


def _round_up(x, m):
    return ((x + m - 1) // m) * m


def _sublane_multiple(dtype):
    # Native sublane packing: 8 for f32, 16 for bf16, 32 for int8/fp8.
    return max(8, 32 // jnp.dtype(dtype).itemsize)


def _tpu_vmem_capacity_bytes():
    try:
        info = pltpu.get_tpu_info()
        cap = getattr(info, "vmem_capacity_bytes", None)
        if cap:
            return int(cap)
    except Exception:
        pass
    return 64 * _MIB  # conservative (v7x-sized) fallback


def _select_tiles(m, n, k, mxu_dtype, out_dtype, tm, tn, tk):
    """Generation-aware tile selection + explicit scoped-VMEM limit."""
    in_is = jnp.dtype(mxu_dtype).itemsize
    out_is = jnp.dtype(out_dtype).itemsize
    sub = _sublane_multiple(mxu_dtype)

    m_pad = _round_up(max(m, 1), sub)
    n_pad = _round_up(max(n, 1), 128)
    k_pad = _round_up(max(k, 1), 128)

    cap = _tpu_vmem_capacity_bytes()
    # Keep headroom for compiler-internal scratch / semaphores.
    budget = min(int(cap * 0.7), 96 * _MIB)
    small_vmem = cap <= 64 * _MIB  # v7x-class (2 TC, 64 MiB VMEM)

    # Large defaults so the MXU work per grid step dwarfs the fixed step cost.
    tm_ = min(tm if tm is not None else 512, m_pad)
    tn_ = min(tn if tn is not None else 512, n_pad)
    tk_ = min(tk if tk is not None else 2048, k_pad)
    tm_ = _round_up(tm_, sub)
    tn_ = _round_up(tn_, 128)
    tk_ = _round_up(tk_, 128)

    def vmem_bytes(a, b, c):
        x_tile = a * c * in_is
        w_tile = b * c * in_is
        bias_t = b * in_is
        o_tile = a * b * out_is
        acc = a * b * 4
        return 2 * (x_tile + w_tile + bias_t + o_tile) + acc  # double-buffered

    # Shrink tk first (doesn't change HBM traffic), then tm, then tn.
    while vmem_bytes(tm_, tn_, tk_) > budget:
        if tk_ > 512:
            tk_ = max(512, (tk_ // 2) // 128 * 128)
        elif tm_ > 256:
            tm_ = max(256, (tm_ // 2) // sub * sub)
        elif tn_ > 128:
            tn_ = max(128, (tn_ // 2) // 128 * 128)
        elif tk_ > 128:
            tk_ = max(128, (tk_ // 2) // 128 * 128)
        elif tm_ > sub:
            tm_ = max(sub, (tm_ // 2) // sub * sub)
        else:
            break

    # v7x has 2 TensorCores/chip: if both parallel axes collapsed to a single
    # tile, split N so dimension_semantics=("parallel","parallel",...) can
    # shard across both cores.
    if small_vmem and m_pad <= tm_ and n_pad <= tn_ and n_pad >= 256:
        tn_ = max(128, (n_pad // 2) // 128 * 128)

    est = vmem_bytes(tm_, tn_, tk_)
    vmem_limit = int(min(budget, max(32 * _MIB, 2 * est)))
    return tm_, tn_, tk_, vmem_limit


@functools.partial(
    jax.jit,
    static_argnames=("tm", "tn", "tk", "vmem_limit_bytes", "compute_dtype"),
)
def _fc_impl(x2d, weight, bias, *, tm, tn, tk, vmem_limit_bytes, compute_dtype):
    m, in_features = x2d.shape
    out_features = weight.shape[0]
    out_dtype = x2d.dtype

    if compute_dtype is not None:
        cdt = jnp.dtype(compute_dtype)
        if x2d.dtype != cdt:
            x2d = x2d.astype(cdt)
        if weight.dtype != cdt:
            weight = weight.astype(cdt)

    m_p = _round_up(m, tm)
    n_p = _round_up(out_features, tn)
    k_p = _round_up(in_features, tk)

    # Pad only the ragged dims (no extra HBM pass for already-aligned arrays).
    if (m_p, k_p) != (m, in_features):
        x2d = jnp.pad(x2d, ((0, m_p - m), (0, k_p - in_features)))
    if (n_p, k_p) != (out_features, in_features):
        weight = jnp.pad(weight, ((0, n_p - out_features), (0, k_p - in_features)))
    if n_p != out_features:
        bias = jnp.pad(bias, (0, n_p - out_features))
    bias2d = bias.reshape(1, n_p)

    grid = (m_p // tm, n_p // tn, k_p // tk)
    gm, gn, _ = grid

    x_is = jnp.dtype(x2d.dtype).itemsize
    w_is = jnp.dtype(weight.dtype).itemsize
    b_is = jnp.dtype(bias2d.dtype).itemsize
    o_is = jnp.dtype(out_dtype).itemsize
    cost = pl.CostEstimate(
        flops=2 * m_p * n_p * k_p,
        transcendentals=0,
        bytes_accessed=(
            gn * m_p * k_p * x_is      # x streamed once per N tile
            + gm * n_p * k_p * w_is    # W streamed once per M tile
            + gm * n_p * b_is          # bias re-read per M tile
            + m_p * n_p * o_is         # output written once
        ),
    )

    out_p = pl.pallas_call(
        _linear_kernel,
        out_shape=jax.ShapeDtypeStruct((m_p, n_p), out_dtype),
        grid_spec=pltpu.PrefetchScalarGridSpec(
            num_scalar_prefetch=0,
            grid=grid,
            in_specs=[
                pl.BlockSpec((tm, tk), lambda i, j, k: (i, k)),   # x tile
                pl.BlockSpec((tn, tk), lambda i, j, k: (j, k)),   # W tile (PyTorch layout)
                pl.BlockSpec((1, tn), lambda i, j, k: (0, j)),    # bias row
            ],
            out_specs=pl.BlockSpec((tm, tn), lambda i, j, k: (i, j)),
            scratch_shapes=[pltpu.VMEM((tm, tn), jnp.float32)],
        ),
        compiler_params=pltpu.CompilerParams(
            dimension_semantics=("parallel", "parallel", "arbitrary"),
            vmem_limit_bytes=vmem_limit_bytes,
        ),
        cost_estimate=cost,
    )(x2d, weight, bias2d)

    return out_p[:m, :out_features]


def fully_connected_forward(x, weight, bias, *, tm=None, tn=None, tk=None,
                            compute_dtype=None):
    """Pallas equivalent of nn.Linear(in_features, out_features)(x).

    x:      (..., in_features)
    weight: (out_features, in_features)   -- PyTorch layout, NOT pre-transposed
    bias:   (out_features,)
    compute_dtype: optional MXU feed dtype (e.g. jnp.bfloat16) for v6e/v7x;
                   accumulation stays f32, output keeps x's dtype.
    """
    out_features, in_features = weight.shape
    lead_shape = x.shape[:-1]
    x2d = x.reshape(-1, in_features)
    m = x2d.shape[0]

    if compute_dtype is not None:
        compute_dtype = jnp.dtype(compute_dtype).name  # hashable static arg
    mxu_dtype = compute_dtype if compute_dtype is not None else x.dtype

    tm_, tn_, tk_, vmem_limit = _select_tiles(
        m, out_features, in_features, mxu_dtype, x.dtype, tm, tn, tk
    )

    out2d = _fc_impl(
        x2d, weight, bias,
        tm=tm_, tn=tn_, tk=tk_,
        vmem_limit_bytes=vmem_limit,
        compute_dtype=compute_dtype,
    )
    return out2d.reshape(*lead_shape, out_features)


if __name__ == "__main__":
    # Small shapes consistent with the module: batch=2, seq=8, in=32, out=64.
    batch, seq, in_features, out_features = 2, 8, 32, 64

    key = jax.random.PRNGKey(0)
    kx, kw, kb = jax.random.split(key, 3)

    x = jax.random.normal(kx, (batch, seq, in_features), dtype=jnp.float32)
    # Deterministic nn.Linear-style uniform init.
    bound = 1.0 / (in_features ** 0.5)
    weight = jax.random.uniform(
        kw, (out_features, in_features), minval=-bound, maxval=bound, dtype=jnp.float32
    )
    bias = jax.random.uniform(
        kb, (out_features,), minval=-bound, maxval=bound, dtype=jnp.float32
    )

    out = fully_connected_forward(x, weight, bias)
    out = jax.block_until_ready(out)

    # Cross-check against plain JAX reference.
    ref = x @ weight.T + bias
    assert out.shape == (batch, seq, out_features)
    assert jnp.allclose(out, ref, atol=1e-5, rtol=1e-5)

    print("KERNEL_OK")
</pallas_src>

<mosaic_0001>
module attributes {stable_mosaic.version = 11 : i64} {
  func.func @_linear_kernel(%arg0: i32, %arg1: i32, %arg2: i32, %arg3: memref<16x128xf32, #tpu.memory_space<vmem>>, %arg4: memref<128x128xf32, #tpu.memory_space<vmem>>, %arg5: memref<1x128xf32, #tpu.memory_space<vmem>>, %arg6: memref<16x128xf32, #tpu.memory_space<vmem>>, %arg7: memref<16x128xf32, #tpu.memory_space<vmem>>) attributes {dimension_semantics = [#tpu.dimension_semantics<parallel>, #tpu.dimension_semantics<parallel>, #tpu.dimension_semantics<arbitrary>], iteration_bounds = array<i64: 1, 1, 1>, scalar_prefetch = 0 : i64, scratch_operands = 1 : i64, tpu.core_type = #tpu.core_type<tc>, window_params = [{transform_indices = @transform_0, window_bounds = array<i64: 16, 128>}, {transform_indices = @transform_1, window_bounds = array<i64: 128, 128>}, {transform_indices = @transform_2, window_bounds = array<i64: 1, 128>}, {transform_indices = @transform_3, window_bounds = array<i64: 16, 128>}]} {
    %c0 = arith.constant 0 : index
    %c0_0 = arith.constant 0 : index
    %0 = vector.load %arg3[%c0, %c0_0] : memref<16x128xf32, #tpu.memory_space<vmem>>, vector<16x128xf32>
    %c0_1 = arith.constant 0 : index
    %c0_2 = arith.constant 0 : index
    %1 = vector.load %arg4[%c0_1, %c0_2] : memref<128x128xf32, #tpu.memory_space<vmem>>, vector<128x128xf32>
    %cst = arith.constant dense<0.000000e+00> : vector<16x128xf32>
    %2 = tpu.matmul %0, %1, %cst {dimension_numbers = #tpu.dot_dimension_numbers<[1], [1], [0], [0], [0, 0, 1, 0], [], []>} : vector<16x128xf32>, vector<128x128xf32>, vector<16x128xf32> -> vector<16x128xf32>
    %c0_i32 = arith.constant 0 : i32
    %3 = arith.cmpi eq, %arg2, %c0_i32 : i32
    %4 = arith.extui %3 : i1 to i32
    %c0_i32_3 = arith.constant 0 : i32
    %5 = arith.cmpi ne, %4, %c0_i32_3 : i32
    scf.if %5 {
      %c0_8 = arith.constant 0 : index
      %c0_9 = arith.constant 0 : index
      %12 = vector.load %arg7[%c0_8, %c0_9] : memref<16x128xf32, #tpu.memory_space<vmem>>, vector<16x128xf32>
      tpu.vector_store %arg7[%c0_8, %c0_9], %2 {strides = array<i32>} : memref<16x128xf32, #tpu.memory_space<vmem>>, vector<16x128xf32>,
    } else {
    }
    %c0_i32_4 = arith.constant 0 : i32
    %6 = arith.cmpi ne, %arg2, %c0_i32_4 : i32
    %7 = arith.extui %6 : i1 to i32
    %c0_i32_5 = arith.constant 0 : i32
    %8 = arith.cmpi ne, %7, %c0_i32_5 : i32
    scf.if %8 {
      %c0_8 = arith.constant 0 : index
      %c0_9 = arith.constant 0 : index
      %12 = vector.load %arg7[%c0_8, %c0_9] : memref<16x128xf32, #tpu.memory_space<vmem>>, vector<16x128xf32>
      %13 = arith.addf %12, %2 : vector<16x128xf32>
      %c0_10 = arith.constant 0 : index
      %c0_11 = arith.constant 0 : index
      %14 = vector.load %arg7[%c0_10, %c0_11] : memref<16x128xf32, #tpu.memory_space<vmem>>, vector<16x128xf32>
      tpu.vector_store %arg7[%c0_10, %c0_11], %13 {strides = array<i32>} : memref<16x128xf32, #tpu.memory_space<vmem>>, vector<16x128xf32>,
    } else {
    }
    %c0_i32_6 = arith.constant 0 : i32
    %9 = arith.cmpi eq, %arg2, %c0_i32_6 : i32
    %10 = arith.extui %9 : i1 to i32
    %c0_i32_7 = arith.constant 0 : i32
    %11 = arith.cmpi ne, %10, %c0_i32_7 : i32
    scf.if %11 {
      %c0_8 = arith.constant 0 : index
      %c0_9 = arith.constant 0 : index
      %12 = vector.load %arg7[%c0_8, %c0_9] : memref<16x128xf32, #tpu.memory_space<vmem>>, vector<16x128xf32>
      %c0_10 = arith.constant 0 : index
      %c0_11 = arith.constant 0 : index
      %13 = vector.load %arg5[%c0_10, %c0_11] : memref<1x128xf32, #tpu.memory_space<vmem>>, vector<1x128xf32>
      %14 = vector.broadcast %13 : vector<1x128xf32> to vector<16x128xf32>
      %15 = arith.addf %12, %14 : vector<16x128xf32>
      %c0_12 = arith.constant 0 : index
      %c0_13 = arith.constant 0 : index
      %16 = vector.load %arg6[%c0_12, %c0_13] : memref<16x128xf32, #tpu.memory_space<vmem>>, vector<16x128xf32>
      tpu.vector_store %arg6[%c0_12, %c0_13], %15 {strides = array<i32>} : memref<16x128xf32, #tpu.memory_space<vmem>>, vector<16x128xf32>,
    } else {
    }
    return
  }
  func.func @transform_0(%arg0: i32, %arg1: i32, %arg2: i32) -> (i32, i32) {
    %c0_i32 = arith.constant 0 : i32
    return %arg0, %arg2 : i32, i32
  }
  func.func @transform_1(%arg0: i32, %arg1: i32, %arg2: i32) -> (i32, i32) {
    %c0_i32 = arith.constant 0 : i32
    return %arg1, %arg2 : i32, i32
  }
  func.func @transform_2(%arg0: i32, %arg1: i32, %arg2: i32) -> (i32, i32) {
    %c0_i32 = arith.constant 0 : i32
    %c0_i32_0 = arith.constant 0 : i32
    return %c0_i32, %arg1 : i32, i32
  }
  func.func @transform_3(%arg0: i32, %arg1: i32, %arg2: i32) -> (i32, i32) {
    %c0_i32 = arith.constant 0 : i32
    return %arg0, %arg1 : i32, i32
  }
}

</mosaic_0001>

<llo_original>
// kernel: _fc_impl.1
$region0: #{_fc_impl.1}
  #allocation0 [shape = 'u32[]', space=smem, size = 0x4, offset = 0x4, fixed_abs, tag = 'smem constant byte address 0x4 - core index']
  #allocation1 [shape = 'u32[72,128]{1,0:T(1,128)}', space=vmem, size = 0x9000, scoped, tag = 'internal scratch']
  #allocation2 [shape = 'f32[16,128]{1,0:T(8,128)}', space=vmem, size = 0x2000, scoped, tag = 'scratch operand']
  %s0 = inlined_call_operand.vmem [shape: f32[16,128], index: 0, kind: input, shape index: {}]
  %s1 = inlined_call_operand.vmem [shape: f32[128,128], index: 1, kind: input, shape index: {}]
  %s2 = inlined_call_operand.vmem [shape: f32[1,128], index: 2, kind: input, shape index: {}]
  %s3 = inlined_call_operand.hbm [shape: f32[16,128], index: 3, kind: output, shape index: {}]
  %s4 = sld [smem:[#allocation0]]
  $region34: #{_fc_impl.1} parent=0
    _
  %s6 = ssub.s32 1, %s4
  %s7 = scalar_select 0, %s6, %s4
  $region1: #{_fc_impl.1} parent=0
    #allocation3 [shape = 'u8[8192]{0}', space=vmem, size = 0x2000, scoped, tag = 'output window, operand 0, single buffered']
    #allocation4 [shape = 's32[1]{0}', space=sflag, size = 0x4, scoped, tag = 'scoped memory for _fc_impl.1']
    %8 = vsyncpa [#allocation4], 0
    // Predicated region
    $region2: #{_fc_impl.1} parent=1 // pred_check
      _
    $region3: #{_fc_impl.1} parent=1 // pred_check_branch
      %10 = sbr.rel (0) target = $region5
    $region4: #{_fc_impl.1} parent=1 // pred_region
      _
    $region5: #{_fc_impl.1} parent=1 // pred_fallthru
      _
    // Predicated region
    $region6: #{_fc_impl.1} parent=1 // pred_check
      _
    $region7: #{_fc_impl.1} parent=1 // pred_check_branch
      %12 = sbr.rel (0) target = $region9
    $region8: #{_fc_impl.1} parent=1 // pred_region
      _
    $region9: #{_fc_impl.1} parent=1 // pred_fallthru
      _
    // Predicated region
    $region10: #{_fc_impl.1} parent=1 // pred_check
      _
    $region11: #{_fc_impl.1} parent=1 // pred_check_branch
      %14 = sbr.rel (0) target = $region13
    $region12: #{_fc_impl.1} parent=1 // pred_region
      _
    $region13: #{_fc_impl.1} parent=1 // pred_fallthru
      _
    %v15 = vld [vmem:[%s0] sm:$0xff]
    %v16 = vld [vmem:[%s0 + $0x8] sm:$0xff]
    %v17 = vld [vmem:[%s1] sm:$0xff]
    %v18 = vld [vmem:[%s1 + $0x8] sm:$0xff]
    %v19 = vld [vmem:[%s1 + $0x10] sm:$0xff]
    %v20 = vld [vmem:[%s1 + $0x18] sm:$0xff]
    %v21 = vld [vmem:[%s1 + $0x20] sm:$0xff]
    %v22 = vld [vmem:[%s1 + $0x28] sm:$0xff]
    %v23 = vld [vmem:[%s1 + $0x30] sm:$0xff]
    %v24 = vld [vmem:[%s1 + $0x38] sm:$0xff]
    %v25 = vld [vmem:[%s1 + $0x40] sm:$0xff]
    %v26 = vld [vmem:[%s1 + $0x48] sm:$0xff]
    %v27 = vld [vmem:[%s1 + $0x50] sm:$0xff]
    %v28 = vld [vmem:[%s1 + $0x58] sm:$0xff]
    %v29 = vld [vmem:[%s1 + $0x60] sm:$0xff]
    %v30 = vld [vmem:[%s1 + $0x68] sm:$0xff]
    %v31 = vld [vmem:[%s1 + $0x70] sm:$0xff]
    %v32 = vld [vmem:[%s1 + $0x78] sm:$0xff]
    %33 = vmatpush.xpose.msra.mxu0 %v32
    %34 = vmatpush.xpose.msra.mxu0 %v31
    %35 = vmatpush.xpose.msra.mxu0 %v30
    %36 = vmatpush.xpose.msra.mxu0 %v29
    %37 = vmatpush.xpose.msra.mxu0 %v28
    %38 = vmatpush.xpose.msra.mxu0 %v27
    %39 = vmatpush.xpose.msra.mxu0 %v26
    %40 = vmatpush.xpose.msra.mxu0 %v25
    %41 = vmatpush.xpose.msra.mxu0 %v24
    %42 = vmatpush.xpose.msra.mxu0 %v23
    %43 = vmatpush.xpose.msra.mxu0 %v22
    %44 = vmatpush.xpose.msra.mxu0 %v21
    %45 = vmatpush.xpose.msra.mxu0 %v20
    %46 = vmatpush.xpose.msra.mxu0 %v19
    %47 = vmatpush.xpose.msra.mxu0 %v18
    %48 = vmatpush.xpose.msra.mxu0 %v17
    %49 = vmatmul.f32.gmra.mxu0 %v15
    %v50 = vpop.f32.mrf.mxu0
    %v51 = vadd.f32 0.0, %v50
    %52 = vmatmul.f32.gmra.mxu0 %v16
    %v53 = vpop.f32.mrf.mxu0
    %v54 = vadd.f32 0.0, %v53
    %55 = vdwg.mxu0
    %p56 = scmp.eq.s32.totalorder 0, 0
    // Predicated region
    $region14: #{_fc_impl.1} parent=1 // pred_check
      %p57 = pneg %p56
    $region15: #{_fc_impl.1} parent=1 // pred_check_branch
      %59 = sbr.rel (%p57) target = $region17
    $region16: #{_fc_impl.1} parent=1 // pred_region
      %60 = vst [vmem:[#allocation2] sm:$0xff] %v51
      %61 = vst [vmem:[#allocation2 + $0x8] sm:$0xff] %v54
    $region17: #{_fc_impl.1} parent=1 // pred_fallthru
      _
    %p62 = scmp.ne.s32.totalorder 0, 0
    // Predicated region
    $region18: #{_fc_impl.1} parent=1 // pred_check
      %p63 = pneg %p62
    $region19: #{_fc_impl.1} parent=1 // pred_check_branch
      %65 = sbr.rel (%p63) target = $region21
    $region20: #{_fc_impl.1} parent=1 // pred_region
      %v66 = vld [vmem:[#allocation2] sm:$0xff]
      %v67 = vld [vmem:[#allocation2 + $0x8] sm:$0xff]
      %v68 = vadd.f32 %v66, %v51
      %v69 = vadd.f32 %v67, %v54
      %70 = vst [vmem:[#allocation2] sm:$0xff] %v68
      %71 = vst [vmem:[#allocation2 + $0x8] sm:$0xff] %v69
    $region21: #{_fc_impl.1} parent=1 // pred_fallthru
      _
    // Predicated region
    $region22: #{_fc_impl.1} parent=1 // pred_check
      %p72 = pneg %p56
    $region23: #{_fc_impl.1} parent=1 // pred_check_branch
      %74 = sbr.rel (%p72) target = $region25
    $region24: #{_fc_impl.1} parent=1 // pred_region
      %v75 = vld [vmem:[#allocation2] sm:$0xff]
      %v76 = vld [vmem:[#allocation2 + $0x8] sm:$0xff]
      %v77 = vld [vmem:[%s2] sm:$0x1]
      %v79 = vperm.slane %v77, 0
      %v81 = vadd.f32 %v75, %v79
      %v82 = vadd.f32 %v76, %v79
      %83 = vst [vmem:[#allocation3] sm:$0xff] %v81
      %84 = vst [vmem:[#allocation3 + $0x8] sm:$0xff] %v82
    $region25: #{_fc_impl.1} parent=1 // pred_fallthru
      _
    // Predicated region
    $region26: #{_fc_impl.1} parent=1 // pred_check
      _
    $region27: #{_fc_impl.1} parent=1 // pred_check_branch
      %86 = sbr.rel (0) target = $region29
    $region28: #{_fc_impl.1} parent=1 // pred_region
      %88 = vsyncadd [#allocation4], 0
      %s89 = sshll.u32 [#allocation3], 4
      %s90 = int_to_ptr.vmem [resolvable:$true] %s89
      %s91 = sshll.u32 %s3, 4
      %s92 = int_to_ptr.hbm [resolvable:$true] %s91
      %97 = dma.vmem_to_hbm [thread:$0]  %s90, 256, %s92, [#allocation4], 128, 128, 8
    $region29: #{_fc_impl.1} parent=1 // pred_fallthru
      _
    // Predicated region
    $region30: #{_fc_impl.1} parent=1 // pred_check
      _
    $region31: #{_fc_impl.1} parent=1 // pred_check_branch
      %99 = sbr.rel (0) target = $region33
    $region32: #{_fc_impl.1} parent=1 // pred_region
      %101 = dma.done [#allocation4], 256
    $region33: #{_fc_impl.1} parent=1 // pred_fallthru
      _
    %102 = vsyncpa [#allocation4], 1

</llo_original>
